<compile_context>
chip_gen: v6e
topology: v6e:2x2x1
jax: 0.10.0
libtpu: 0.0.40
codegen_flags: <defaults>
</compile_context>

<pallas_src>
import functools
import math

import jax
import jax.numpy as jnp
from jax.experimental import pallas as pl
from jax.experimental.pallas import tpu as pltpu


def _round_up(x: int, m: int) -> int:
    return ((x + m - 1) // m) * m


# Murmur3 fmix32 constants, expressed as signed int32 (wrapping arithmetic).
_GOLDEN = -1640531527       # 0x9E3779B9
_MIX1 = -2048144789         # 0x85EBCA6B
_MIX2 = -1028477387         # 0xC2B2AE35


def _lshr32(v, n: int):
    """Logical right shift for int32 vectors (mask off the sign extension)."""
    return (v >> n) & jnp.int32((1 << (32 - n)) - 1)


def _fmix32(v):
    """Murmur3-style avalanche finalizer on int32 (wrapping) values."""
    v = v ^ _lshr32(v, 16)
    v = v * jnp.int32(_MIX1)
    v = v ^ _lshr32(v, 13)
    v = v * jnp.int32(_MIX2)
    v = v ^ _lshr32(v, 16)
    return v


# ---------------------------------------------------------------------------
# Kernels
# ---------------------------------------------------------------------------
def _aium_eval_kernel(x_ref, w_ref, b_ref, o_ref):
    c = o_ref.shape[-1]
    # Single fused matmul: (tm, C) @ (C, 2C) -> (tm, 2C), f32 accumulation.
    h = jnp.dot(x_ref[...], w_ref[...], preferred_element_type=jnp.float32)
    h = h + b_ref[...]                              # (tm, 2C) + (1, 2C)
    o_ref[...] = (jnp.tanh(h[:, :c]) * h[:, c:]).astype(o_ref.dtype)


def _aium_dropout_kernel(seed_ref, x_ref, w_ref, b_ref, o_ref, *,
                         threshold24: int, inv_keep: float):
    c = o_ref.shape[-1]
    h = jnp.dot(x_ref[...], w_ref[...], preferred_element_type=jnp.float32)
    h = h + b_ref[...]
    y = jnp.tanh(h[:, :c]) * h[:, c:]

    tm = y.shape[0]
    # Counter-based dropout mask: one distinct int32 counter per output element
    # (global row * C + col), mixed with the user seed via a murmur3-style
    # finalizer.  Pure int32 VPU ops -> lowers on TPU and in interpret mode.
    row = jax.lax.broadcasted_iota(jnp.int32, y.shape, 0)
    col = jax.lax.broadcasted_iota(jnp.int32, y.shape, 1)
    tile_base = pl.program_id(0) * jnp.int32(tm)
    ctr = (tile_base + row) * jnp.int32(c) + col
    k = _fmix32(ctr + seed_ref[0] * jnp.int32(_GOLDEN))

    # keep with prob (1 - p): low 24 hashed bits >= round(p * 2^24)
    keep = (k & jnp.int32(0x00FFFFFF)) >= jnp.int32(threshold24)
    y = jnp.where(keep, y * jnp.float32(inv_keep), 0.0)

    o_ref[...] = y.astype(o_ref.dtype)


# ---------------------------------------------------------------------------
# Wrapper
# ---------------------------------------------------------------------------
def aium_forward(x, w1, b1, w2, b2, *, dropout_p: float = 0.0,
                 training: bool = False, seed: int = 0, tm: int = 512):
    """x: [batch, num_cols, channels]; w*: [C, C] (PyTorch (out, in) layout);
    b*: [C].  Returns the same shape/dtype as x."""
    B, N, C = x.shape
    M = B * N

    # Fuse the two linears: Wt = [W1^T | W2^T], shape (C, 2C); biases -> (1, 2C).
    wt = jnp.concatenate([jnp.transpose(w1), jnp.transpose(w2)], axis=1)
    wt = wt.astype(x.dtype)                          # MXU eats bf16/f32 natively
    bb = jnp.concatenate([b1, b2]).reshape(1, 2 * C).astype(jnp.float32)

    # Row tiling: tile is a multiple of the sublane requirement (16 for packed
    # bf16, 8 for f32); pad M up to a multiple of the tile.
    sub = 16 if x.dtype == jnp.dtype(jnp.bfloat16) else 8
    tm_eff = min(int(tm), _round_up(M, sub))
    tm_eff = max(sub, _round_up(tm_eff, sub))
    M_pad = _round_up(M, tm_eff)

    x2d = x.reshape(M, C)
    if M_pad != M:
        x2d = jnp.pad(x2d, ((0, M_pad - M), (0, 0)))
    grid = (M_pad // tm_eff,)

    # VMEM budget: double-buffered x/out tiles + resident fused weight + bias.
    bpe = x2d.dtype.itemsize
    est = 2 * 2 * (tm_eff * C * bpe) + (C * 2 * C * bpe) + (2 * C * 4)
    vmem_limit = int(min(64 * 1024 * 1024, max(32 * 1024 * 1024, 2 * est)))

    cparams = pltpu.CompilerParams(
        dimension_semantics=("parallel",),           # shards grid across TCs on v7x
        vmem_limit_bytes=vmem_limit)

    out_shape = jax.ShapeDtypeStruct((M_pad, C), x.dtype)
    x_spec_shape = (tm_eff, C)

    if training and dropout_p > 0.0:
        t = int(round(float(dropout_p) * float(1 << 24)))
        t = max(0, min(t, 1 << 24))
        kernel = functools.partial(
            _aium_dropout_kernel,
            threshold24=t,
            inv_keep=1.0 / (1.0 - float(dropout_p)))
        seed_arr = jnp.array([seed], dtype=jnp.int32)
        out2d = pl.pallas_call(
            kernel,
            out_shape=out_shape,
            grid_spec=pltpu.PrefetchScalarGridSpec(
                num_scalar_prefetch=1,               # seed -> SMEM
                grid=grid,
                in_specs=[
                    pl.BlockSpec(x_spec_shape, lambda i, s: (i, 0)),   # x tile
                    pl.BlockSpec((C, 2 * C), lambda i, s: (0, 0)),     # [W1^T|W2^T]
                    pl.BlockSpec((1, 2 * C), lambda i, s: (0, 0)),     # [b1|b2]
                ],
                out_specs=pl.BlockSpec(x_spec_shape, lambda i, s: (i, 0)),
            ),
            compiler_params=cparams,
        )(seed_arr, x2d, wt, bb)
    else:
        out2d = pl.pallas_call(
            _aium_eval_kernel,
            out_shape=out_shape,
            grid_spec=pltpu.PrefetchScalarGridSpec(
                num_scalar_prefetch=0,               # no unused seed arg in eval
                grid=grid,
                in_specs=[
                    pl.BlockSpec(x_spec_shape, lambda i: (i, 0)),
                    pl.BlockSpec((C, 2 * C), lambda i: (0, 0)),
                    pl.BlockSpec((1, 2 * C), lambda i: (0, 0)),
                ],
                out_specs=pl.BlockSpec(x_spec_shape, lambda i: (i, 0)),
            ),
            compiler_params=cparams,
        )(x2d, wt, bb)

    if M_pad != M:
        out2d = out2d[:M]
    return out2d.reshape(B, N, C)


# ---------------------------------------------------------------------------
# Deterministic parameter init (mirrors attenuated_kaiming_uniform_: uniform
# weights with an attenuated bound, zero biases). Synthetic init, no checkpoint.
# ---------------------------------------------------------------------------
def init_aium_params(key, channels: int, dtype=jnp.float32):
    k1, k2 = jax.random.split(key)
    fan_in = channels
    gain = 1.0 / math.sqrt(10.0)
    bound = gain * math.sqrt(3.0 / fan_in)
    w1 = jax.random.uniform(k1, (channels, channels), dtype, -bound, bound)
    w2 = jax.random.uniform(k2, (channels, channels), dtype, -bound, bound)
    b1 = jnp.zeros((channels,), dtype)
    b2 = jnp.zeros((channels,), dtype)
    return w1, b1, w2, b2


def aium_reference(x, w1, b1, w2, b2):
    # Pure-JAX reference of the PyTorch forward (eval mode: dropout = identity).
    h1 = jnp.tanh(jnp.einsum("bnc,oc->bno", x, w1) + b1)
    h2 = jnp.einsum("bnc,oc->bno", x, w2) + b2
    return h1 * h2


if __name__ == "__main__":
    key = jax.random.PRNGKey(0)
    kx, kp = jax.random.split(key)

    # Lane-dense channels (multiple of 128); ExcelFormer default channel
    # widths (e.g. 256) are also multiples of 128.
    batch, num_cols, channels = 2, 8, 128
    x = jax.random.normal(kx, (batch, num_cols, channels), jnp.float32)
    w1, b1, w2, b2 = init_aium_params(kp, channels)

    # Eval mode (dropout is identity) -- compare against the pure-JAX reference.
    out = aium_forward(x, w1, b1, w2, b2, dropout_p=0.5, training=False)
    out = jax.block_until_ready(out)
    ref = aium_reference(x, w1, b1, w2, b2)
    assert out.shape == x.shape and out.dtype == x.dtype
    assert jnp.allclose(out, ref, atol=1e-5, rtol=1e-5), "mismatch vs reference"

    # Training mode (dropout active) -- shape / finiteness / drop-rate sanity.
    out_tr = aium_forward(x, w1, b1, w2, b2, dropout_p=0.5, training=True,
                          seed=123)
    out_tr = jax.block_until_ready(out_tr)
    assert out_tr.shape == x.shape and out_tr.dtype == x.dtype
    assert bool(jnp.isfinite(out_tr).all())
    zero_frac = float(jnp.mean(out_tr == 0.0))
    assert 0.25 < zero_frac < 0.75, f"unexpected dropout rate: {zero_frac}"

    print("KERNEL_OK")
</pallas_src>

<mosaic_0001>
module attributes {stable_mosaic.version = 11 : i64} {
  func.func @_aium_eval_kernel(%arg0: i32, %arg1: memref<16x128xf32, #tpu.memory_space<vmem>>, %arg2: memref<128x256xf32, #tpu.memory_space<vmem>>, %arg3: memref<1x256xf32, #tpu.memory_space<vmem>>, %arg4: memref<16x128xf32, #tpu.memory_space<vmem>>) attributes {dimension_semantics = [#tpu.dimension_semantics<parallel>], iteration_bounds = array<i64: 1>, scalar_prefetch = 0 : i64, scratch_operands = 0 : i64, tpu.core_type = #tpu.core_type<tc>, window_params = [{transform_indices = @transform_0, window_bounds = array<i64: 16, 128>}, {pipeline_mode = #tpu.pipeline_mode<synchronous>, transform_indices = @transform_1, window_bounds = array<i64: 128, 256>}, {pipeline_mode = #tpu.pipeline_mode<synchronous>, transform_indices = @transform_2, window_bounds = array<i64: 1, 256>}, {transform_indices = @transform_3, window_bounds = array<i64: 16, 128>}]} {
    %c0 = arith.constant 0 : index
    %c0_0 = arith.constant 0 : index
    %0 = vector.load %arg1[%c0, %c0_0] : memref<16x128xf32, #tpu.memory_space<vmem>>, vector<16x128xf32>
    %c0_1 = arith.constant 0 : index
    %c0_2 = arith.constant 0 : index
    %1 = vector.load %arg2[%c0_1, %c0_2] : memref<128x256xf32, #tpu.memory_space<vmem>>, vector<128x256xf32>
    %cst = arith.constant dense<0.000000e+00> : vector<16x256xf32>
    %2 = tpu.matmul %0, %1, %cst {dimension_numbers = #tpu.dot_dimension_numbers<[1], [0], [0], [1], [0, 0, 1, 1], [], []>} : vector<16x128xf32>, vector<128x256xf32>, vector<16x256xf32> -> vector<16x256xf32>
    %c0_3 = arith.constant 0 : index
    %c0_4 = arith.constant 0 : index
    %3 = vector.load %arg3[%c0_3, %c0_4] : memref<1x256xf32, #tpu.memory_space<vmem>>, vector<1x256xf32>
    %4 = vector.broadcast %3 : vector<1x256xf32> to vector<16x256xf32>
    %5 = arith.addf %2, %4 : vector<16x256xf32>
    %6 = vector.extract_strided_slice %5 {offsets = [0, 0], sizes = [16, 128], strides = [1, 1]} : vector<16x256xf32> to vector<16x128xf32>
    %7 = math.tanh %6 : vector<16x128xf32>
    %8 = vector.extract_strided_slice %5 {offsets = [0, 128], sizes = [16, 128], strides = [1, 1]} : vector<16x256xf32> to vector<16x128xf32>
    %9 = arith.mulf %7, %8 : vector<16x128xf32>
    %c0_5 = arith.constant 0 : index
    %c0_6 = arith.constant 0 : index
    %10 = vector.load %arg4[%c0_5, %c0_6] : memref<16x128xf32, #tpu.memory_space<vmem>>, vector<16x128xf32>
    tpu.vector_store %arg4[%c0_5, %c0_6], %9 {strides = array<i32>} : memref<16x128xf32, #tpu.memory_space<vmem>>, vector<16x128xf32>,
    return
  }
  func.func @transform_0(%arg0: i32) -> (i32, i32) {
    %c0_i32 = arith.constant 0 : i32
    %c0_i32_0 = arith.constant 0 : i32
    return %arg0, %c0_i32 : i32, i32
  }
  func.func @transform_1(%arg0: i32) -> (i32, i32) {
    %c0_i32 = arith.constant 0 : i32
    %c0_i32_0 = arith.constant 0 : i32
    %c0_i32_1 = arith.constant 0 : i32
    return %c0_i32, %c0_i32_0 : i32, i32
  }
  func.func @transform_2(%arg0: i32) -> (i32, i32) {
    %c0_i32 = arith.constant 0 : i32
    %c0_i32_0 = arith.constant 0 : i32
    %c0_i32_1 = arith.constant 0 : i32
    return %c0_i32, %c0_i32_0 : i32, i32
  }
  func.func @transform_3(%arg0: i32) -> (i32, i32) {
    %c0_i32 = arith.constant 0 : i32
    %c0_i32_0 = arith.constant 0 : i32
    return %arg0, %c0_i32 : i32, i32
  }
}

</mosaic_0001>

<llo_original>
// kernel: tpu_custom_call.1
$region0: #{tpu_custom_call.1}
  #allocation0 [shape = 'u32[]', space=smem, size = 0x4, offset = 0x4, fixed_abs, tag = 'smem constant byte address 0x4 - core index']
  #allocation1 [shape = 'u32[144,128]{1,0:T(1,128)}', space=vmem, size = 0x12000, scoped, tag = 'internal scratch']
  %s0 = inlined_call_operand.hbm [shape: f32[16,128], index: 0, kind: input, shape index: {}]
  %s1 = inlined_call_operand.hbm [shape: f32[128,256], index: 1, kind: input, shape index: {}]
  %s2 = inlined_call_operand.vmem [shape: f32[1,256], index: 2, kind: input, shape index: {}]
  %s3 = inlined_call_operand.hbm [shape: f32[16,128], index: 3, kind: output, shape index: {}]
  %s4 = sld [smem:[#allocation0]]
  $region30: #{tpu_custom_call.1} parent=0
    _
  %s6 = ssub.s32 1, %s4
  %s7 = scalar_select 0, %s6, %s4
  $region1: #{tpu_custom_call.1} parent=0
    #allocation2 [shape = 'u8[8192]{0}', space=vmem, size = 0x2000, scoped, tag = 'input window, operand 0, single buffered']
    #allocation3 [shape = 's32[1]{0}', space=sflag, size = 0x4, scoped, tag = 'scoped memory for tpu_custom_call.1']
    #allocation4 [shape = 's32[1]{0}', space=sflag, size = 0x4, scoped, tag = 'scoped memory for tpu_custom_call.1']
    #allocation5 [shape = 'u8[131072]{0}', space=vmem, size = 0x20000, scoped, tag = 'input window, operand 1, single buffered']
    #allocation6 [shape = 's32[1]{0}', space=sflag, size = 0x4, scoped, tag = 'scoped memory for tpu_custom_call.1']
    #allocation7 [shape = 'u8[8192]{0}', space=vmem, size = 0x2000, scoped, tag = 'output window, operand 0, single buffered']
    %8 = vsyncpa [#allocation3], 0
    %9 = vsyncpa [#allocation6], 0
    %10 = vsyncpa [#allocation4], 0
    // Predicated region
    $region2: #{tpu_custom_call.1} parent=1 // pred_check
      _
    $region3: #{tpu_custom_call.1} parent=1 // pred_check_branch
      %12 = sbr.rel (0) target = $region5
    $region4: #{tpu_custom_call.1} parent=1 // pred_region
      %s14 = ssub.s32 256, 256
      %15 = vsyncadd [#allocation3], %s14
      %s16 = sshll.u32 [#allocation2], 4
      %s17 = int_to_ptr.vmem [resolvable:$true] %s16
      %22 = dma.hbm_to_vmem [thread:$0]  %s0, 256, %s17, [#allocation3], 128, 128, 8
    $region5: #{tpu_custom_call.1} parent=1 // pred_fallthru
      _
    // Predicated region
    $region6: #{tpu_custom_call.1} parent=1 // pred_check
      _
    $region7: #{tpu_custom_call.1} parent=1 // pred_check_branch
      %24 = sbr.rel (0) target = $region9
    $region8: #{tpu_custom_call.1} parent=1 // pred_region
      %s26 = ssub.s32 4096, 4096
      %27 = vsyncadd [#allocation6], %s26
      %s28 = sshll.u32 [#allocation5], 4
      %s29 = int_to_ptr.vmem [resolvable:$true] %s28
      %34 = dma.hbm_to_vmem [thread:$0]  %s1, 4096, %s29, [#allocation6], 256, 256, 16
    $region9: #{tpu_custom_call.1} parent=1 // pred_fallthru
      _
    // Predicated region
    $region10: #{tpu_custom_call.1} parent=1 // pred_check
      _
    $region11: #{tpu_custom_call.1} parent=1 // pred_check_branch
      %36 = sbr.rel (0) target = $region13
    $region12: #{tpu_custom_call.1} parent=1 // pred_region
      _
    $region13: #{tpu_custom_call.1} parent=1 // pred_fallthru
      _
    // Predicated region
    $region14: #{tpu_custom_call.1} parent=1 // pred_check
      _
    $region15: #{tpu_custom_call.1} parent=1 // pred_check_branch
      %38 = sbr.rel (0) target = $region17
    $region16: #{tpu_custom_call.1} parent=1 // pred_region
      %39 = dma.done [#allocation3], 256
    $region17: #{tpu_custom_call.1} parent=1 // pred_fallthru
      _
    // Predicated region
    $region18: #{tpu_custom_call.1} parent=1 // pred_check
      _
    $region19: #{tpu_custom_call.1} parent=1 // pred_check_branch
      %41 = sbr.rel (0) target = $region21
    $region20: #{tpu_custom_call.1} parent=1 // pred_region
      %42 = dma.done [#allocation6], 4096
    $region21: #{tpu_custom_call.1} parent=1 // pred_fallthru
      _
    %v43 = vld [vmem:[#allocation2] sm:$0xff]
    %v44 = vld [vmem:[#allocation2 + $0x8] sm:$0xff]
    %v45 = vld [vmem:[#allocation5] sm:$0xff]
    %v46 = vld [vmem:[#allocation5 + $0x8] sm:$0xff]
    %v47 = vld [vmem:[#allocation5 + $0x10] sm:$0xff]
    %v48 = vld [vmem:[#allocation5 + $0x18] sm:$0xff]
    %v49 = vld [vmem:[#allocation5 + $0x20] sm:$0xff]
    %v50 = vld [vmem:[#allocation5 + $0x28] sm:$0xff]
    %v51 = vld [vmem:[#allocation5 + $0x30] sm:$0xff]
    %v52 = vld [vmem:[#allocation5 + $0x38] sm:$0xff]
    %v53 = vld [vmem:[#allocation5 + $0x40] sm:$0xff]
    %v54 = vld [vmem:[#allocation5 + $0x48] sm:$0xff]
    %v55 = vld [vmem:[#allocation5 + $0x50] sm:$0xff]
    %v56 = vld [vmem:[#allocation5 + $0x58] sm:$0xff]
    %v57 = vld [vmem:[#allocation5 + $0x60] sm:$0xff]
    %v58 = vld [vmem:[#allocation5 + $0x68] sm:$0xff]
    %v59 = vld [vmem:[#allocation5 + $0x70] sm:$0xff]
    %v60 = vld [vmem:[#allocation5 + $0x78] sm:$0xff]
    %v61 = vld [vmem:[#allocation5 + $0x80] sm:$0xff]
    %v62 = vld [vmem:[#allocation5 + $0x88] sm:$0xff]
    %v63 = vld [vmem:[#allocation5 + $0x90] sm:$0xff]
    %v64 = vld [vmem:[#allocation5 + $0x98] sm:$0xff]
    %v65 = vld [vmem:[#allocation5 + $0xa0] sm:$0xff]
    %v66 = vld [vmem:[#allocation5 + $0xa8] sm:$0xff]
    %v67 = vld [vmem:[#allocation5 + $0xb0] sm:$0xff]
    %v68 = vld [vmem:[#allocation5 + $0xb8] sm:$0xff]
    %v69 = vld [vmem:[#allocation5 + $0xc0] sm:$0xff]
    %v70 = vld [vmem:[#allocation5 + $0xc8] sm:$0xff]
    %v71 = vld [vmem:[#allocation5 + $0xd0] sm:$0xff]
    %v72 = vld [vmem:[#allocation5 + $0xd8] sm:$0xff]
    %v73 = vld [vmem:[#allocation5 + $0xe0] sm:$0xff]
    %v74 = vld [vmem:[#allocation5 + $0xe8] sm:$0xff]
    %v75 = vld [vmem:[#allocation5 + $0xf0] sm:$0xff]
    %v76 = vld [vmem:[#allocation5 + $0xf8] sm:$0xff]
    %v77 = vld [vmem:[%s2] sm:$0x3]
    %v79 = vlaneseq
    %v80 = vshrl.u32 %v79, 7
    %v81 = vsub.s32 0, %v80
    %v82 = vrot.slane %v77, %v81
    %v83 = vlaneseq
    %v84 = vshrl.u32 %v83, 7
    %v85 = vsub.s32 1, %v84
    %v86 = vrot.slane %v77, %v85
    %89 = vmatprep.subr.mxu0 %v76
    %90 = vmatpush1.msra.mxu0 %v75
    %91 = vmatprep.subr.mxu0 %v74
    %92 = vmatpush1.msra.mxu0 %v73
    %93 = vmatprep.subr.mxu0 %v72
    %94 = vmatpush1.msra.mxu0 %v71
    %95 = vmatprep.subr.mxu0 %v70
    %96 = vmatpush1.msra.mxu0 %v69
    %97 = vmatprep.subr.mxu0 %v68
    %98 = vmatpush1.msra.mxu0 %v67
    %99 = vmatprep.subr.mxu0 %v66
    %100 = vmatpush1.msra.mxu0 %v65
    %101 = vmatprep.subr.mxu0 %v64
    %102 = vmatpush1.msra.mxu0 %v63
    %103 = vmatprep.subr.mxu0 %v62
    %104 = vmatpush1.msra.mxu0 %v61
    %105 = vmatprep.subr.mxu0 %v60
    %106 = vmatpush1.msra.mxu0 %v59
    %107 = vmatprep.subr.mxu0 %v58
    %108 = vmatpush1.msra.mxu0 %v57
    %109 = vmatprep.subr.mxu0 %v56
    %110 = vmatpush1.msra.mxu0 %v55
    %111 = vmatprep.subr.mxu0 %v54
    %112 = vmatpush1.msra.mxu0 %v53
    %113 = vmatprep.subr.mxu0 %v52
    %114 = vmatpush1.msra.mxu0 %v51
    %115 = vmatprep.subr.mxu0 %v50
    %116 = vmatpush1.msra.mxu0 %v49
    %117 = vmatprep.subr.mxu0 %v48
    %118 = vmatpush1.msra.mxu0 %v47
    %119 = vmatprep.subr.mxu0 %v46
    %120 = vmatpush1.msra.mxu0 %v45
    %121 = vmatprep.subr.mxu0 0.0
    %122 = vmatpush2.msra.mxu0 0.0
    %123 = vmatprep.subr.mxu0 0.0
    %124 = vmatpush2.msra.mxu0 0.0
    %125 = vmatprep.subr.mxu0 0.0
    %126 = vmatpush2.msra.mxu0 0.0
    %127 = vmatprep.subr.mxu0 0.0
    %128 = vmatpush2.msra.mxu0 0.0
    %129 = vmatprep.subr.mxu0 0.0
    %130 = vmatpush2.msra.mxu0 0.0
    %131 = vmatprep.subr.mxu0 0.0
    %132 = vmatpush2.msra.mxu0 0.0
    %133 = vmatprep.subr.mxu0 0.0
    %134 = vmatpush2.msra.mxu0 0.0
    %135 = vmatprep.subr.mxu0 0.0
    %136 = vmatpush2.msra.mxu0 0.0
    %137 = vmatprep.subr.mxu0 0.0
    %138 = vmatpush2.msra.mxu0 0.0
    %139 = vmatprep.subr.mxu0 0.0
    %140 = vmatpush2.msra.mxu0 0.0
    %141 = vmatprep.subr.mxu0 0.0
    %142 = vmatpush2.msra.mxu0 0.0
    %143 = vmatprep.subr.mxu0 0.0
    %144 = vmatpush2.msra.mxu0 0.0
    %145 = vmatprep.subr.mxu0 0.0
    %146 = vmatpush2.msra.mxu0 0.0
    %147 = vmatprep.subr.mxu0 0.0
    %148 = vmatpush2.msra.mxu0 0.0
    %149 = vmatprep.subr.mxu0 0.0
    %150 = vmatpush2.msra.mxu0 0.0
    %151 = vmatprep.subr.mxu0 0.0
    %152 = vmatpush2.msra.mxu0 0.0
    %153 = vmatprep.mubr.f32.mxu0 0.0
    %154 = vmatmul.mubr.f32.gmra.mxu0 %v43
    %v155 = vpop.f32.mrf.mxu0
    %v156 = vadd.f32 %v82, %v155
    %v157 = vpop.f32.mrf.mxu0
    %v158 = vadd.f32 %v86, %v157
    %159 = vmatprep.mubr.f32.mxu0 0.0
    %160 = vmatmul.mubr.f32.gmra.mxu0 %v44
    %v161 = vpop.f32.mrf.mxu0
    %v162 = vadd.f32 %v82, %v161
    %v163 = vpop.f32.mrf.mxu0
    %v164 = vadd.f32 %v86, %v163
    %165 = vdwg.mxu0
    %v166 = vtanh.pop %v156
    %v167 = vtanh.pop %v162
    %v168 = vmul.f32 %v166, %v158
    %v169 = vmul.f32 %v167, %v164
    %170 = vst [vmem:[#allocation7] sm:$0xff] %v168
    %171 = vst [vmem:[#allocation7 + $0x8] sm:$0xff] %v169
    // Predicated region
    $region22: #{tpu_custom_call.1} parent=1 // pred_check
      _
    $region23: #{tpu_custom_call.1} parent=1 // pred_check_branch
      %173 = sbr.rel (0) target = $region25
    $region24: #{tpu_custom_call.1} parent=1 // pred_region
      %s175 = ssub.s32 256, 256
      %176 = vsyncadd [#allocation4], %s175
      %s177 = sshll.u32 [#allocation7], 4
      %s178 = int_to_ptr.vmem [resolvable:$true] %s177
      %183 = dma.vmem_to_hbm [thread:$0]  %s178, 256, %s3, [#allocation4], 128, 128, 8
    $region25: #{tpu_custom_call.1} parent=1 // pred_fallthru
      _
    // Predicated region
    $region26: #{tpu_custom_call.1} parent=1 // pred_check
      _
    $region27: #{tpu_custom_call.1} parent=1 // pred_check_branch
      %185 = sbr.rel (0) target = $region29
    $region28: #{tpu_custom_call.1} parent=1 // pred_region
      %186 = dma.done [#allocation4], 256
    $region29: #{tpu_custom_call.1} parent=1 // pred_fallthru
      _
    %187 = vsyncpa [#allocation3], 1
    %188 = vsyncpa [#allocation6], 1
    %189 = vsyncpa [#allocation4], 1

</llo_original>
